<compile_context>
chip_gen: v7x
topology: tpu7x:2x2x1
jax: 0.10.0
libtpu: 0.0.40
codegen_flags: <defaults>
</compile_context>

<pallas_src>
import functools

import jax
import jax.numpy as jnp
from jax import lax
from jax.experimental import pallas as pl
from jax.experimental.pallas import tpu as pltpu

KSIZE = 3  # depthwise kernel size (kernel=3, stride=1, padding=1 in the PyTorch module)


def _dwsep_kernel(x_ref, dw_ref, b1_ref, pw_ref, b2_ref, mask_ref, o_ref, *, H, W, NB):
    # x_ref   : (NB, C, H*W)   batch block, lane axis = flattened H*W (lane-dense)
    # dw_ref  : (9, C, H*W)    depthwise taps, BN1 scale folded in, lane-replicated
    # b1_ref  : (C, H*W)       folded BN1 bias, lane-replicated
    # pw_ref  : (Cout, C)      pointwise weights (BN2 scale folded in)
    # b2_ref  : (Cout, H*W)    folded BN2 bias, lane-replicated
    # mask_ref: (4, H*W)       precomputed boundary masks (left/right/up/down valid)
    # o_ref   : (NB, Cout, H*W)
    HW = H * W

    # Constants: read once per grid step (constant index_map -> DMA'd once overall).
    w = dw_ref[...]            # (9, C, HW)
    pw = pw_ref[...]           # (Cout, C)
    b1 = b1_ref[...]           # (C, HW)
    b2 = b2_ref[...]           # (Cout, HW)
    mw_l = mask_ref[0:1, :]    # valid when the left  neighbour exists (dw = -1)
    mw_r = mask_ref[1:2, :]    # valid when the right neighbour exists (dw = +1)
    mh_u = mask_ref[2:3, :]    # valid when the row above exists       (dh = -1)
    mh_d = mask_ref[3:4, :]    # valid when the row below exists       (dh = +1)

    for b in range(NB):        # static, small unrolled loop over the batch block
        x = x_ref[b]           # (C, HW) float32

        # ---- horizontal taps: 2 XLU rolls + 2 mask muls, shared by all three rows ----
        hL = pltpu.roll(x, shift=1, axis=1) * mw_l        # dw = -1
        hC = x                                            # dw =  0
        hR = pltpu.roll(x, shift=HW - 1, axis=1) * mw_r   # dw = +1

        # ---- depthwise 3x3: center row initializes the accumulator (taps 3,4,5) ----
        acc = hL * w[3] + hC * w[4] + hR * w[5]
        # row above (dh = -1, taps 0,1,2): vertical roll of the already-masked tiles
        row_u = (pltpu.roll(hL, shift=W, axis=1) * w[0]
                 + pltpu.roll(hC, shift=W, axis=1) * w[1]
                 + pltpu.roll(hR, shift=W, axis=1) * w[2])
        # row below (dh = +1, taps 6,7,8)
        row_d = (pltpu.roll(hL, shift=HW - W, axis=1) * w[6]
                 + pltpu.roll(hC, shift=HW - W, axis=1) * w[7]
                 + pltpu.roll(hR, shift=HW - W, axis=1) * w[8])
        # single vertical mask multiply per row group (separable masking)
        acc = acc + row_u * mh_u + row_d * mh_d

        # ---- BN1 (scale folded into dw weights) + ReLU6 ----
        y = jnp.clip(acc + b1, 0.0, 6.0)                  # (C, HW)

        # ---- pointwise 1x1 conv: one MXU matmul, lane-dense N = HW output ----
        out = jnp.dot(pw, y, preferred_element_type=jnp.float32)   # (Cout, HW)

        # ---- BN2 (scale folded into pw weights) + ReLU6 ----
        out = jnp.clip(out + b2, 0.0, 6.0)

        o_ref[b] = out.astype(o_ref.dtype)


def _pick_nb(N, C, Cout, HW, itemsize=4, budget_bytes=8 << 20):
    """Largest batch block NB that divides N, keeps >= 2 grid steps when N >= 2
    (so v7x's two TensorCores both get work), and keeps the double-buffered
    in+out blocks comfortably inside the scoped-VMEM budget."""
    best = 1
    for nb in range(1, N + 1):
        if N % nb:
            continue
        if N >= 2 and N // nb < 2:
            continue
        if 2 * nb * (C + Cout) * HW * itemsize > budget_bytes:
            continue
        best = nb
    return best


def depthwise_separable_conv(x_nchw, dw_w, pw_w, s1, b1, s2, b2):
    """x_nchw: (N, C, H, W) float32.
    dw_w: (C, 1, 3, 3) depthwise weights (PyTorch layout), pw_w: (Cout, C, 1, 1).
    s1/b1, s2/b2: folded eval-mode BatchNorm scale/bias.
    Returns (N, Cout, H, W) float32."""
    N, C, H, W = x_nchw.shape
    Cout = pw_w.shape[0]
    HW = H * W

    # Free, contiguity-preserving reshape (no transpose, no pad -> no extra HBM traffic).
    x_flat = x_nchw.reshape(N, C, HW)

    # Fold BN scales into the conv weights; pre-replicate per-channel constants across
    # lanes so the kernel uses plain VPU muls (no per-tap lane extract + broadcast).
    dw_folded = (dw_w.reshape(C, KSIZE * KSIZE).astype(jnp.float32) * s1[:, None]).T  # (9, C)
    dw_rep = jnp.broadcast_to(dw_folded[:, :, None], (KSIZE * KSIZE, C, HW))
    b1_rep = jnp.broadcast_to(b1.astype(jnp.float32)[:, None], (C, HW))
    pw_scaled = pw_w.reshape(Cout, C).astype(jnp.float32) * s2[:, None]                # (Cout, C)
    b2_rep = jnp.broadcast_to(b2.astype(jnp.float32)[:, None], (Cout, HW))

    # Boundary masks for the 3x3 halo, precomputed once (not per grid step).
    lane = jnp.arange(HW, dtype=jnp.int32)
    w_idx, h_idx = lane % W, lane // W
    masks = jnp.stack([
        (w_idx >= 1).astype(jnp.float32),       # left  neighbour exists (dw = -1)
        (w_idx <= W - 2).astype(jnp.float32),   # right neighbour exists (dw = +1)
        (h_idx >= 1).astype(jnp.float32),       # row above exists       (dh = -1)
        (h_idx <= H - 2).astype(jnp.float32),   # row below exists       (dh = +1)
    ], axis=0)                                  # (4, HW)

    NB = _pick_nb(N, C, Cout, HW)
    grid = (N // NB,)

    kernel = functools.partial(_dwsep_kernel, H=H, W=W, NB=NB)

    out_flat = pl.pallas_call(
        kernel,
        out_shape=jax.ShapeDtypeStruct((N, Cout, HW), x_nchw.dtype),
        grid=grid,
        in_specs=[
            pl.BlockSpec((NB, C, HW), lambda n: (n, 0, 0)),
            pl.BlockSpec((KSIZE * KSIZE, C, HW), lambda n: (0, 0, 0)),
            pl.BlockSpec((C, HW), lambda n: (0, 0)),
            pl.BlockSpec((Cout, C), lambda n: (0, 0)),
            pl.BlockSpec((Cout, HW), lambda n: (0, 0)),
            pl.BlockSpec((4, HW), lambda n: (0, 0)),
        ],
        out_specs=pl.BlockSpec((NB, Cout, HW), lambda n: (n, 0, 0)),
        compiler_params=pltpu.CompilerParams(dimension_semantics=("parallel",)),
    )(x_flat, dw_rep, b1_rep, pw_scaled, b2_rep, masks)

    # Free reshape back to NCHW.
    return out_flat.reshape(N, Cout, H, W)


def _reference(x, dw_w, pw_w, s1, b1, s2, b2):
    """Pure-JAX reference (lax.conv, PyTorch NCHW/OIHW layouts) for correctness checking."""
    N, C, H, W = x.shape
    Cout = pw_w.shape[0]
    y = lax.conv_general_dilated(
        x, dw_w, window_strides=(1, 1), padding=((1, 1), (1, 1)),
        dimension_numbers=("NCHW", "OIHW", "NCHW"), feature_group_count=C)
    y = y * s1.reshape(1, C, 1, 1) + b1.reshape(1, C, 1, 1)
    y = jnp.clip(y, 0.0, 6.0)
    y2 = lax.conv_general_dilated(
        y, pw_w, window_strides=(1, 1), padding=((0, 0), (0, 0)),
        dimension_numbers=("NCHW", "OIHW", "NCHW"))
    y2 = y2 * s2.reshape(1, Cout, 1, 1) + b2.reshape(1, Cout, 1, 1)
    y2 = jnp.clip(y2, 0.0, 6.0)
    return y2


if __name__ == "__main__":
    # DepthWiseSeparableConv(in_put=8, out_put=16, stride=1); N=4 exercises NB=2, grid=2.
    N, C, Cout, H, W = 4, 8, 16, 16, 16
    key = jax.random.PRNGKey(0)
    kx, kdw, kpw = jax.random.split(key, 3)

    x = jax.random.normal(kx, (N, C, H, W), dtype=jnp.float32)

    # Depthwise Conv2d(C, C, kernel=3, groups=C, bias=False): PyTorch weight (C, 1, 3, 3).
    dw_w = 0.1 * jax.random.normal(kdw, (C, 1, KSIZE, KSIZE), dtype=jnp.float32)
    # Pointwise Conv2d(C, Cout, kernel=1, bias=False): PyTorch weight (Cout, C, 1, 1).
    pw_w = 0.1 * jax.random.normal(kpw, (Cout, C, 1, 1), dtype=jnp.float32)

    # Deterministic BatchNorm parameters (eval-mode), folded into scale/bias.
    eps = 1e-5
    g1 = 1.0 + 0.1 * jnp.arange(C, dtype=jnp.float32)
    be1 = 0.05 * jnp.arange(C, dtype=jnp.float32)
    rm1 = 0.01 * jnp.arange(C, dtype=jnp.float32)
    rv1 = 1.0 + 0.02 * jnp.arange(C, dtype=jnp.float32)
    s1 = g1 / jnp.sqrt(rv1 + eps)
    b1 = be1 - rm1 * s1

    g2 = 1.0 + 0.05 * jnp.arange(Cout, dtype=jnp.float32)
    be2 = -0.02 * jnp.arange(Cout, dtype=jnp.float32)
    rm2 = 0.005 * jnp.arange(Cout, dtype=jnp.float32)
    rv2 = 1.0 + 0.01 * jnp.arange(Cout, dtype=jnp.float32)
    s2 = g2 / jnp.sqrt(rv2 + eps)
    b2 = be2 - rm2 * s2

    out = depthwise_separable_conv(x, dw_w, pw_w, s1, b1, s2, b2)
    out = jax.block_until_ready(out)

    ref = _reference(x, dw_w, pw_w, s1, b1, s2, b2)
    assert out.shape == (N, Cout, H, W), out.shape
    assert jnp.allclose(out, ref, atol=1e-4, rtol=1e-4), float(jnp.max(jnp.abs(out - ref)))

    print("KERNEL_OK")
</pallas_src>

<mosaic_0001>
module attributes {stable_mosaic.version = 11 : i64} {
  func.func @_dwsep_kernel(%arg0: i32, %arg1: memref<2x8x256xf32, #tpu.memory_space<vmem>>, %arg2: memref<9x8x256xf32, #tpu.memory_space<vmem>>, %arg3: memref<8x256xf32, #tpu.memory_space<vmem>>, %arg4: memref<16x8xf32, #tpu.memory_space<vmem>>, %arg5: memref<16x256xf32, #tpu.memory_space<vmem>>, %arg6: memref<4x256xf32, #tpu.memory_space<vmem>>, %arg7: memref<2x16x256xf32, #tpu.memory_space<vmem>>) attributes {dimension_semantics = [#tpu.dimension_semantics<parallel>], iteration_bounds = array<i64: 2>, scalar_prefetch = 0 : i64, scratch_operands = 0 : i64, tpu.core_type = #tpu.core_type<tc>, window_params = [{transform_indices = @transform_0, window_bounds = array<i64: 2, 8, 256>}, {pipeline_mode = #tpu.pipeline_mode<synchronous>, transform_indices = @transform_1, window_bounds = array<i64: 9, 8, 256>}, {pipeline_mode = #tpu.pipeline_mode<synchronous>, transform_indices = @transform_2, window_bounds = array<i64: 8, 256>}, {pipeline_mode = #tpu.pipeline_mode<synchronous>, transform_indices = @transform_3, window_bounds = array<i64: 16, 8>}, {pipeline_mode = #tpu.pipeline_mode<synchronous>, transform_indices = @transform_4, window_bounds = array<i64: 16, 256>}, {pipeline_mode = #tpu.pipeline_mode<synchronous>, transform_indices = @transform_5, window_bounds = array<i64: 4, 256>}, {transform_indices = @transform_6, window_bounds = array<i64: 2, 16, 256>}]} {
    %c0 = arith.constant 0 : index
    %c0_0 = arith.constant 0 : index
    %c0_1 = arith.constant 0 : index
    %0 = vector.load %arg2[%c0, %c0_0, %c0_1] : memref<9x8x256xf32, #tpu.memory_space<vmem>>, vector<9x8x256xf32>
    %c0_2 = arith.constant 0 : index
    %c0_3 = arith.constant 0 : index
    %1 = vector.load %arg4[%c0_2, %c0_3] : memref<16x8xf32, #tpu.memory_space<vmem>>, vector<16x8xf32>
    %c0_4 = arith.constant 0 : index
    %c0_5 = arith.constant 0 : index
    %2 = vector.load %arg3[%c0_4, %c0_5] : memref<8x256xf32, #tpu.memory_space<vmem>>, vector<8x256xf32>
    %c0_6 = arith.constant 0 : index
    %c0_7 = arith.constant 0 : index
    %3 = vector.load %arg5[%c0_6, %c0_7] : memref<16x256xf32, #tpu.memory_space<vmem>>, vector<16x256xf32>
    %c0_8 = arith.constant 0 : index
    %c0_9 = arith.constant 0 : index
    %4 = vector.load %arg6[%c0_8, %c0_9] : memref<4x256xf32, #tpu.memory_space<vmem>>, vector<1x256xf32>
    %c1 = arith.constant 1 : index
    %c0_10 = arith.constant 0 : index
    %5 = vector.load %arg6[%c1, %c0_10] : memref<4x256xf32, #tpu.memory_space<vmem>>, vector<1x256xf32>
    %c2 = arith.constant 2 : index
    %c0_11 = arith.constant 0 : index
    %6 = vector.load %arg6[%c2, %c0_11] : memref<4x256xf32, #tpu.memory_space<vmem>>, vector<1x256xf32>
    %c3 = arith.constant 3 : index
    %c0_12 = arith.constant 0 : index
    %7 = vector.load %arg6[%c3, %c0_12] : memref<4x256xf32, #tpu.memory_space<vmem>>, vector<1x256xf32>
    %c0_13 = arith.constant 0 : index
    %c0_14 = arith.constant 0 : index
    %c0_15 = arith.constant 0 : index
    %8 = vector.load %arg1[%c0_13, %c0_14, %c0_15] : memref<2x8x256xf32, #tpu.memory_space<vmem>>, vector<1x8x256xf32>
    %9 = vector.shape_cast %8 : vector<1x8x256xf32> to vector<8x256xf32>
    %c1_i32 = arith.constant 1 : i32
    %10 = tpu.dynamic_rotate %9 by %c1_i32 dim 1 : vector<8x256xf32>, i32 -> vector<8x256xf32>
    %11 = vector.broadcast %4 : vector<1x256xf32> to vector<8x256xf32>
    %12 = arith.mulf %10, %11 : vector<8x256xf32>
    %c255_i32 = arith.constant 255 : i32
    %13 = tpu.dynamic_rotate %9 by %c255_i32 dim 1 : vector<8x256xf32>, i32 -> vector<8x256xf32>
    %14 = vector.broadcast %5 : vector<1x256xf32> to vector<8x256xf32>
    %15 = arith.mulf %13, %14 : vector<8x256xf32>
    %16 = vector.extract_strided_slice %0 {offsets = [3, 0, 0], sizes = [1, 8, 256], strides = [1, 1, 1]} : vector<9x8x256xf32> to vector<1x8x256xf32>
    %17 = vector.shape_cast %16 : vector<1x8x256xf32> to vector<8x256xf32>
    %18 = arith.mulf %12, %17 : vector<8x256xf32>
    %19 = vector.extract_strided_slice %0 {offsets = [4, 0, 0], sizes = [1, 8, 256], strides = [1, 1, 1]} : vector<9x8x256xf32> to vector<1x8x256xf32>
    %20 = vector.shape_cast %19 : vector<1x8x256xf32> to vector<8x256xf32>
    %21 = arith.mulf %9, %20 : vector<8x256xf32>
    %22 = arith.addf %18, %21 : vector<8x256xf32>
    %23 = vector.extract_strided_slice %0 {offsets = [5, 0, 0], sizes = [1, 8, 256], strides = [1, 1, 1]} : vector<9x8x256xf32> to vector<1x8x256xf32>
    %24 = vector.shape_cast %23 : vector<1x8x256xf32> to vector<8x256xf32>
    %25 = arith.mulf %15, %24 : vector<8x256xf32>
    %26 = arith.addf %22, %25 : vector<8x256xf32>
    %c16_i32 = arith.constant 16 : i32
    %27 = tpu.dynamic_rotate %12 by %c16_i32 dim 1 : vector<8x256xf32>, i32 -> vector<8x256xf32>
    %28 = vector.extract_strided_slice %0 {offsets = [0, 0, 0], sizes = [1, 8, 256], strides = [1, 1, 1]} : vector<9x8x256xf32> to vector<1x8x256xf32>
    %29 = vector.shape_cast %28 : vector<1x8x256xf32> to vector<8x256xf32>
    %30 = arith.mulf %27, %29 : vector<8x256xf32>
    %c16_i32_16 = arith.constant 16 : i32
    %31 = tpu.dynamic_rotate %9 by %c16_i32_16 dim 1 : vector<8x256xf32>, i32 -> vector<8x256xf32>
    %32 = vector.extract_strided_slice %0 {offsets = [1, 0, 0], sizes = [1, 8, 256], strides = [1, 1, 1]} : vector<9x8x256xf32> to vector<1x8x256xf32>
    %33 = vector.shape_cast %32 : vector<1x8x256xf32> to vector<8x256xf32>
    %34 = arith.mulf %31, %33 : vector<8x256xf32>
    %35 = arith.addf %30, %34 : vector<8x256xf32>
    %c16_i32_17 = arith.constant 16 : i32
    %36 = tpu.dynamic_rotate %15 by %c16_i32_17 dim 1 : vector<8x256xf32>, i32 -> vector<8x256xf32>
    %37 = vector.extract_strided_slice %0 {offsets = [2, 0, 0], sizes = [1, 8, 256], strides = [1, 1, 1]} : vector<9x8x256xf32> to vector<1x8x256xf32>
    %38 = vector.shape_cast %37 : vector<1x8x256xf32> to vector<8x256xf32>
    %39 = arith.mulf %36, %38 : vector<8x256xf32>
    %40 = arith.addf %35, %39 : vector<8x256xf32>
    %c240_i32 = arith.constant 240 : i32
    %41 = tpu.dynamic_rotate %12 by %c240_i32 dim 1 : vector<8x256xf32>, i32 -> vector<8x256xf32>
    %42 = vector.extract_strided_slice %0 {offsets = [6, 0, 0], sizes = [1, 8, 256], strides = [1, 1, 1]} : vector<9x8x256xf32> to vector<1x8x256xf32>
    %43 = vector.shape_cast %42 : vector<1x8x256xf32> to vector<8x256xf32>
    %44 = arith.mulf %41, %43 : vector<8x256xf32>
    %c240_i32_18 = arith.constant 240 : i32
    %45 = tpu.dynamic_rotate %9 by %c240_i32_18 dim 1 : vector<8x256xf32>, i32 -> vector<8x256xf32>
    %46 = vector.extract_strided_slice %0 {offsets = [7, 0, 0], sizes = [1, 8, 256], strides = [1, 1, 1]} : vector<9x8x256xf32> to vector<1x8x256xf32>
    %47 = vector.shape_cast %46 : vector<1x8x256xf32> to vector<8x256xf32>
    %48 = arith.mulf %45, %47 : vector<8x256xf32>
    %49 = arith.addf %44, %48 : vector<8x256xf32>
    %c240_i32_19 = arith.constant 240 : i32
    %50 = tpu.dynamic_rotate %15 by %c240_i32_19 dim 1 : vector<8x256xf32>, i32 -> vector<8x256xf32>
    %51 = vector.extract_strided_slice %0 {offsets = [8, 0, 0], sizes = [1, 8, 256], strides = [1, 1, 1]} : vector<9x8x256xf32> to vector<1x8x256xf32>
    %52 = vector.shape_cast %51 : vector<1x8x256xf32> to vector<8x256xf32>
    %53 = arith.mulf %50, %52 : vector<8x256xf32>
    %54 = arith.addf %49, %53 : vector<8x256xf32>
    %55 = vector.broadcast %6 : vector<1x256xf32> to vector<8x256xf32>
    %56 = arith.mulf %40, %55 : vector<8x256xf32>
    %57 = arith.addf %26, %56 : vector<8x256xf32>
    %58 = vector.broadcast %7 : vector<1x256xf32> to vector<8x256xf32>
    %59 = arith.mulf %54, %58 : vector<8x256xf32>
    %60 = arith.addf %57, %59 : vector<8x256xf32>
    %61 = arith.addf %60, %2 : vector<8x256xf32>
    %cst = arith.constant 0.000000e+00 : f32
    %cst_20 = arith.constant 6.000000e+00 : f32
    %62 = vector.broadcast %cst : f32 to vector<8x256xf32>
    %63 = arith.maximumf %62, %61 : vector<8x256xf32>
    %64 = vector.broadcast %cst_20 : f32 to vector<8x256xf32>
    %65 = arith.minimumf %64, %63 : vector<8x256xf32>
    %cst_21 = arith.constant dense<0.000000e+00> : vector<16x256xf32>
    %66 = tpu.matmul %1, %65, %cst_21 {dimension_numbers = #tpu.dot_dimension_numbers<[1], [0], [0], [1], [0, 0, 1, 1], [], []>} : vector<16x8xf32>, vector<8x256xf32>, vector<16x256xf32> -> vector<16x256xf32>
    %67 = arith.addf %66, %3 : vector<16x256xf32>
    %cst_22 = arith.constant 0.000000e+00 : f32
    %cst_23 = arith.constant 6.000000e+00 : f32
    %68 = vector.broadcast %cst_22 : f32 to vector<16x256xf32>
    %69 = arith.maximumf %68, %67 : vector<16x256xf32>
    %70 = vector.broadcast %cst_23 : f32 to vector<16x256xf32>
    %71 = arith.minimumf %70, %69 : vector<16x256xf32>
    %c0_24 = arith.constant 0 : index
    %c0_25 = arith.constant 0 : index
    %c0_26 = arith.constant 0 : index
    %72 = vector.load %arg7[%c0_24, %c0_25, %c0_26] : memref<2x16x256xf32, #tpu.memory_space<vmem>>, vector<1x16x256xf32>
    %73 = vector.shape_cast %72 : vector<1x16x256xf32> to vector<16x256xf32>
    %74 = vector.shape_cast %71 : vector<16x256xf32> to vector<1x16x256xf32>
    tpu.vector_store %arg7[%c0_24, %c0_25, %c0_26], %74 {strides = array<i32>} : memref<2x16x256xf32, #tpu.memory_space<vmem>>, vector<1x16x256xf32>,
    %c1_27 = arith.constant 1 : index
    %c0_28 = arith.constant 0 : index
    %c0_29 = arith.constant 0 : index
    %75 = vector.load %arg1[%c1_27, %c0_28, %c0_29] : memref<2x8x256xf32, #tpu.memory_space<vmem>>, vector<1x8x256xf32>
    %76 = vector.shape_cast %75 : vector<1x8x256xf32> to vector<8x256xf32>
    %c1_i32_30 = arith.constant 1 : i32
    %77 = tpu.dynamic_rotate %76 by %c1_i32_30 dim 1 : vector<8x256xf32>, i32 -> vector<8x256xf32>
    %78 = vector.broadcast %4 : vector<1x256xf32> to vector<8x256xf32>
    %79 = arith.mulf %77, %78 : vector<8x256xf32>
    %c255_i32_31 = arith.constant 255 : i32
    %80 = tpu.dynamic_rotate %76 by %c255_i32_31 dim 1 : vector<8x256xf32>, i32 -> vector<8x256xf32>
    %81 = vector.broadcast %5 : vector<1x256xf32> to vector<8x256xf32>
    %82 = arith.mulf %80, %81 : vector<8x256xf32>
    %83 = vector.extract_strided_slice %0 {offsets = [3, 0, 0], sizes = [1, 8, 256], strides = [1, 1, 1]} : vector<9x8x256xf32> to vector<1x8x256xf32>
    %84 = vector.shape_cast %83 : vector<1x8x256xf32> to vector<8x256xf32>
    %85 = arith.mulf %79, %84 : vector<8x256xf32>
    %86 = vector.extract_strided_slice %0 {offsets = [4, 0, 0], sizes = [1, 8, 256], strides = [1, 1, 1]} : vector<9x8x256xf32> to vector<1x8x256xf32>
    %87 = vector.shape_cast %86 : vector<1x8x256xf32> to vector<8x256xf32>
    %88 = arith.mulf %76, %87 : vector<8x256xf32>
    %89 = arith.addf %85, %88 : vector<8x256xf32>
    %90 = vector.extract_strided_slice %0 {offsets = [5, 0, 0], sizes = [1, 8, 256], strides = [1, 1, 1]} : vector<9x8x256xf32> to vector<1x8x256xf32>
    %91 = vector.shape_cast %90 : vector<1x8x256xf32> to vector<8x256xf32>
    %92 = arith.mulf %82, %91 : vector<8x256xf32>
    %93 = arith.addf %89, %92 : vector<8x256xf32>
    %c16_i32_32 = arith.constant 16 : i32
    %94 = tpu.dynamic_rotate %79 by %c16_i32_32 dim 1 : vector<8x256xf32>, i32 -> vector<8x256xf32>
    %95 = vector.extract_strided_slice %0 {offsets = [0, 0, 0], sizes = [1, 8, 256], strides = [1, 1, 1]} : vector<9x8x256xf32> to vector<1x8x256xf32>
    %96 = vector.shape_cast %95 : vector<1x8x256xf32> to vector<8x256xf32>
    %97 = arith.mulf %94, %96 : vector<8x256xf32>
    %c16_i32_33 = arith.constant 16 : i32
    %98 = tpu.dynamic_rotate %76 by %c16_i32_33 dim 1 : vector<8x256xf32>, i32 -> vector<8x256xf32>
    %99 = vector.extract_strided_slice %0 {offsets = [1, 0, 0], sizes = [1, 8, 256], strides = [1, 1, 1]} : vector<9x8x256xf32> to vector<1x8x256xf32>
    %100 = vector.shape_cast %99 : vector<1x8x256xf32> to vector<8x256xf32>
    %101 = arith.mulf %98, %100 : vector<8x256xf32>
    %102 = arith.addf %97, %101 : vector<8x256xf32>
    %c16_i32_34 = arith.constant 16 : i32
    %103 = tpu.dynamic_rotate %82 by %c16_i32_34 dim 1 : vector<8x256xf32>, i32 -> vector<8x256xf32>
    %104 = vector.extract_strided_slice %0 {offsets = [2, 0, 0], sizes = [1, 8, 256], strides = [1, 1, 1]} : vector<9x8x256xf32> to vector<1x8x256xf32>
    %105 = vector.shape_cast %104 : vector<1x8x256xf32> to vector<8x256xf32>
    %106 = arith.mulf %103, %105 : vector<8x256xf32>
    %107 = arith.addf %102, %106 : vector<8x256xf32>
    %c240_i32_35 = arith.constant 240 : i32
    %108 = tpu.dynamic_rotate %79 by %c240_i32_35 dim 1 : vector<8x256xf32>, i32 -> vector<8x256xf32>
    %109 = vector.extract_strided_slice %0 {offsets = [6, 0, 0], sizes = [1, 8, 256], strides = [1, 1, 1]} : vector<9x8x256xf32> to vector<1x8x256xf32>
    %110 = vector.shape_cast %109 : vector<1x8x256xf32> to vector<8x256xf32>
    %111 = arith.mulf %108, %110 : vector<8x256xf32>
    %c240_i32_36 = arith.constant 240 : i32
    %112 = tpu.dynamic_rotate %76 by %c240_i32_36 dim 1 : vector<8x256xf32>, i32 -> vector<8x256xf32>
    %113 = vector.extract_strided_slice %0 {offsets = [7, 0, 0], sizes = [1, 8, 256], strides = [1, 1, 1]} : vector<9x8x256xf32> to vector<1x8x256xf32>
    %114 = vector.shape_cast %113 : vector<1x8x256xf32> to vector<8x256xf32>
    %115 = arith.mulf %112, %114 : vector<8x256xf32>
    %116 = arith.addf %111, %115 : vector<8x256xf32>
    %c240_i32_37 = arith.constant 240 : i32
    %117 = tpu.dynamic_rotate %82 by %c240_i32_37 dim 1 : vector<8x256xf32>, i32 -> vector<8x256xf32>
    %118 = vector.extract_strided_slice %0 {offsets = [8, 0, 0], sizes = [1, 8, 256], strides = [1, 1, 1]} : vector<9x8x256xf32> to vector<1x8x256xf32>
    %119 = vector.shape_cast %118 : vector<1x8x256xf32> to vector<8x256xf32>
    %120 = arith.mulf %117, %119 : vector<8x256xf32>
    %121 = arith.addf %116, %120 : vector<8x256xf32>
    %122 = vector.broadcast %6 : vector<1x256xf32> to vector<8x256xf32>
    %123 = arith.mulf %107, %122 : vector<8x256xf32>
    %124 = arith.addf %93, %123 : vector<8x256xf32>
    %125 = vector.broadcast %7 : vector<1x256xf32> to vector<8x256xf32>
    %126 = arith.mulf %121, %125 : vector<8x256xf32>
    %127 = arith.addf %124, %126 : vector<8x256xf32>
    %128 = arith.addf %127, %2 : vector<8x256xf32>
    %cst_38 = arith.constant 0.000000e+00 : f32
    %cst_39 = arith.constant 6.000000e+00 : f32
    %129 = vector.broadcast %cst_38 : f32 to vector<8x256xf32>
    %130 = arith.maximumf %129, %128 : vector<8x256xf32>
    %131 = vector.broadcast %cst_39 : f32 to vector<8x256xf32>
    %132 = arith.minimumf %131, %130 : vector<8x256xf32>
    %cst_40 = arith.constant dense<0.000000e+00> : vector<16x256xf32>
    %133 = tpu.matmul %1, %132, %cst_40 {dimension_numbers = #tpu.dot_dimension_numbers<[1], [0], [0], [1], [0, 0, 1, 1], [], []>} : vector<16x8xf32>, vector<8x256xf32>, vector<16x256xf32> -> vector<16x256xf32>
    %134 = arith.addf %133, %3 : vector<16x256xf32>
    %cst_41 = arith.constant 0.000000e+00 : f32
    %cst_42 = arith.constant 6.000000e+00 : f32
    %135 = vector.broadcast %cst_41 : f32 to vector<16x256xf32>
    %136 = arith.maximumf %135, %134 : vector<16x256xf32>
    %137 = vector.broadcast %cst_42 : f32 to vector<16x256xf32>
    %138 = arith.minimumf %137, %136 : vector<16x256xf32>
    %c1_43 = arith.constant 1 : index
    %c0_44 = arith.constant 0 : index
    %c0_45 = arith.constant 0 : index
    %139 = vector.load %arg7[%c1_43, %c0_44, %c0_45] : memref<2x16x256xf32, #tpu.memory_space<vmem>>, vector<1x16x256xf32>
    %140 = vector.shape_cast %139 : vector<1x16x256xf32> to vector<16x256xf32>
    %141 = vector.shape_cast %138 : vector<16x256xf32> to vector<1x16x256xf32>
    tpu.vector_store %arg7[%c1_43, %c0_44, %c0_45], %141 {strides = array<i32>} : memref<2x16x256xf32, #tpu.memory_space<vmem>>, vector<1x16x256xf32>,
    return
  }
  func.func @transform_0(%arg0: i32) -> (i32, i32, i32) {
    %c0_i32 = arith.constant 0 : i32
    %c0_i32_0 = arith.constant 0 : i32
    %c0_i32_1 = arith.constant 0 : i32
    return %arg0, %c0_i32, %c0_i32_0 : i32, i32, i32
  }
  func.func @transform_1(%arg0: i32) -> (i32, i32, i32) {
    %c0_i32 = arith.constant 0 : i32
    %c0_i32_0 = arith.constant 0 : i32
    %c0_i32_1 = arith.constant 0 : i32
    %c0_i32_2 = arith.constant 0 : i32
    return %c0_i32, %c0_i32_0, %c0_i32_1 : i32, i32, i32
  }
  func.func @transform_2(%arg0: i32) -> (i32, i32) {
    %c0_i32 = arith.constant 0 : i32
    %c0_i32_0 = arith.constant 0 : i32
    %c0_i32_1 = arith.constant 0 : i32
    return %c0_i32, %c0_i32_0 : i32, i32
  }
  func.func @transform_3(%arg0: i32) -> (i32, i32) {
    %c0_i32 = arith.constant 0 : i32
    %c0_i32_0 = arith.constant 0 : i32
    %c0_i32_1 = arith.constant 0 : i32
    return %c0_i32, %c0_i32_0 : i32, i32
  }
  func.func @transform_4(%arg0: i32) -> (i32, i32) {
    %c0_i32 = arith.constant 0 : i32
    %c0_i32_0 = arith.constant 0 : i32
    %c0_i32_1 = arith.constant 0 : i32
    return %c0_i32, %c0_i32_0 : i32, i32
  }
  func.func @transform_5(%arg0: i32) -> (i32, i32) {
    %c0_i32 = arith.constant 0 : i32
    %c0_i32_0 = arith.constant 0 : i32
    %c0_i32_1 = arith.constant 0 : i32
    return %c0_i32, %c0_i32_0 : i32, i32
  }
  func.func @transform_6(%arg0: i32) -> (i32, i32, i32) {
    %c0_i32 = arith.constant 0 : i32
    %c0_i32_0 = arith.constant 0 : i32
    %c0_i32_1 = arith.constant 0 : i32
    return %arg0, %c0_i32, %c0_i32_0 : i32, i32, i32
  }
}

</mosaic_0001>

<llo_original>
// kernel: tpu_custom_call.1
$region0: #{tpu_custom_call.1}
  #allocation0 [shape = 'u32[]', space=smem, size = 0x4, offset = 0x4, fixed_abs, tag = 'smem constant byte address 0x4 - core index']
  #allocation1 [shape = 'u32[144,128]{1,0:T(1,128)}', space=vmem, size = 0x12000, scoped, tag = 'internal scratch']
  %s0 = inlined_call_operand.hbm [shape: f32[4,8,256], index: 0, kind: input, shape index: {}]
  %s1 = inlined_call_operand.hbm [shape: f32[9,8,256], index: 1, kind: input, shape index: {}]
  %s2 = inlined_call_operand.hbm [shape: f32[8,256], index: 2, kind: input, shape index: {}]
  %s3 = inlined_call_operand.vmem [shape: f32[16,8], index: 3, kind: input, shape index: {}]
  %s4 = inlined_call_operand.vmem [shape: f32[16,256], index: 4, kind: input, shape index: {}]
  %s5 = inlined_call_operand.vmem [shape: f32[4,256], index: 5, kind: input, shape index: {}]
  %s6 = inlined_call_operand.hbm [shape: f32[4,16,256], index: 6, kind: output, shape index: {}]
  %s7 = sld [smem:[#allocation0]]
  $region69: #{tpu_custom_call.1} parent=0
    _
  %s9 = ssub.s32 1, %s7
  %s10 = scalar_select 0, %s9, %s7
  $region1: #{tpu_custom_call.1} parent=0
    #allocation2 [shape = 'u8[32768]{0}', space=vmem, size = 0x8000, scoped, tag = 'input window, operand 0']
    #allocation3 [shape = 's32[2]{0}', space=sflag, size = 0x8, scoped, tag = 'scoped memory for tpu_custom_call.1']
    #allocation4 [shape = 's32[2]{0}', space=sflag, size = 0x8, scoped, tag = 'scoped memory for tpu_custom_call.1']
    #allocation5 [shape = 'u8[73728]{0}', space=vmem, size = 0x12000, scoped, tag = 'input window, operand 1, single buffered']
    #allocation6 [shape = 's32[1]{0}', space=sflag, size = 0x4, scoped, tag = 'scoped memory for tpu_custom_call.1']
    #allocation7 [shape = 'u8[8192]{0}', space=vmem, size = 0x2000, scoped, tag = 'input window, operand 2, single buffered']
    #allocation8 [shape = 'u8[65536]{0}', space=vmem, size = 0x10000, scoped, tag = 'output window, operand 0']
    %11 = vsyncpa [#allocation3], 0
    %s12 = scalar_lea.sflag [#allocation3], 1
    %13 = vsyncpa %s12, 0
    %14 = vsyncpa [#allocation6], 0
    %15 = vsyncpa [#allocation4], 0
    %s16 = scalar_lea.sflag [#allocation4], 1
    %17 = vsyncpa %s16, 0
    loop: start=0, step=1, limit=4
    $region2: #{tpu_custom_call.1} parent=1 // loop_pre_header
      _
    $region3: #{tpu_custom_call.1} parent=1 // loop_header
      %s19 = sphi 0, %s23
      %p20 = scmp.ge.s32.totalorder %s19, 4
      %s29 = sphi 0, %s31
      %s32 = sphi 0, %s29
      %s33 = sphi 0, %s32
      %s49 = sphi 0, %s33
      %s53 = sphi 0, %s53
      %s55 = sphi 0, %s53
      %s56 = sphi 0, %s55
      %s70 = sphi 0, %s56
      %s74 = sphi 0, %s74
      %s76 = sphi 0, %s74
      %s77 = sphi 0, %s76
      %s91 = sphi 0, %s77
      %s95 = sphi 0, %s95
      %s97 = sphi 0, %s95
      %s98 = sphi 0, %s97
      %s112 = sphi 0, %s98
      %s116 = sphi 0, %s116
      %s118 = sphi 0, %s116
      %s119 = sphi 0, %s118
      %s133 = sphi 0, %s119
      %s137 = sphi 0, %s137
      %s139 = sphi 0, %s137
      %s140 = sphi 0, %s139
      %s154 = sphi 0, %s140
      %s160 = sphi 0, %s162
      %s163 = sphi 0, %s160
      %s164 = sphi 0, %s163
      %s180 = sphi 0, %s164
    $region4: #{tpu_custom_call.1} parent=1 // loop_header_branch
      %22 = sbr.rel (%p20) target = $region8
    $region5: #{tpu_custom_call.1} parent=1 // loop_body
      %s24 = ssub.s32 %s19, 1
      %s25 = ssub.s32 %s19, 2
      %s26 = sadd.s32 %s19, 1
      %s27 = ssub.s32 %s19, %s26
      %p28 = scmp.eq.s32.totalorder %s27, 0
      %s30 = sadd.s32 %s29, 1
      %s31 = scalar_select %p28, %s29, %s30
      %p34 = pneg %p28
      %p35 = scmp.eq.s32.totalorder %s19, 1
      %p36 = por %p34, %p35
      %p37 = scmp.ne.s32.totalorder %s29, %s32
      %p38 = scmp.eq.s32.totalorder %s19, 0
      %p39 = por %p37, %p38
      %p40 = scmp.ne.s32.totalorder %s29, %s32
      %p41 = scmp.eq.s32.totalorder %s24, 1
      %p42 = por %p40, %p41
      %p43 = scmp.ne.s32.totalorder %s32, %s33
      %p44 = scmp.eq.s32.totalorder %s24, 0
      %p45 = por %p43, %p44
      %p46 = scmp.ne.s32.totalorder %s32, %s33
      %p47 = scmp.eq.s32.totalorder %s25, 1
      %p48 = por %p46, %p47
      %p50 = scmp.ne.s32.totalorder %s33, %s49
      %p51 = scmp.eq.s32.totalorder %s25, 0
      %p52 = por %p50, %p51
      %s54 = sadd.s32 %s53, 1
      %p57 = scmp.eq.s32.totalorder %s19, 1
      %p58 = scmp.ne.s32.totalorder %s53, %s55
      %p59 = scmp.eq.s32.totalorder %s19, 0
      %p60 = por %p58, %p59
      %p61 = scmp.ne.s32.totalorder %s53, %s55
      %p62 = scmp.eq.s32.totalorder %s24, 1
      %p63 = por %p61, %p62
      %p64 = scmp.ne.s32.totalorder %s55, %s56
      %p65 = scmp.eq.s32.totalorder %s24, 0
      %p66 = por %p64, %p65
      %p67 = scmp.ne.s32.totalorder %s55, %s56
      %p68 = scmp.eq.s32.totalorder %s25, 1
      %p69 = por %p67, %p68
      %p71 = scmp.ne.s32.totalorder %s56, %s70
      %p72 = scmp.eq.s32.totalorder %s25, 0
      %p73 = por %p71, %p72
      %s75 = sadd.s32 %s74, 1
      %p78 = scmp.eq.s32.totalorder %s19, 1
      %p79 = scmp.ne.s32.totalorder %s74, %s76
      %p80 = scmp.eq.s32.totalorder %s19, 0
      %p81 = por %p79, %p80
      %p82 = scmp.ne.s32.totalorder %s74, %s76
      %p83 = scmp.eq.s32.totalorder %s24, 1
      %p84 = por %p82, %p83
      %p85 = scmp.ne.s32.totalorder %s76, %s77
      %p86 = scmp.eq.s32.totalorder %s24, 0
      %p87 = por %p85, %p86
      %p88 = scmp.ne.s32.totalorder %s76, %s77
      %p89 = scmp.eq.s32.totalorder %s25, 1
      %p90 = por %p88, %p89
      %p92 = scmp.ne.s32.totalorder %s77, %s91
      %p93 = scmp.eq.s32.totalorder %s25, 0
      %p94 = por %p92, %p93
      %s96 = sadd.s32 %s95, 1
      %p99 = scmp.eq.s32.totalorder %s19, 1
      %p100 = scmp.ne.s32.totalorder %s95, %s97
      %p101 = scmp.eq.s32.totalorder %s19, 0
      %p102 = por %p100, %p101
      %p103 = scmp.ne.s32.totalorder %s95, %s97
      %p104 = scmp.eq.s32.totalorder %s24, 1
      %p105 = por %p103, %p104
      %p106 = scmp.ne.s32.totalorder %s97, %s98
      %p107 = scmp.eq.s32.totalorder %s24, 0
      %p108 = por %p106, %p107
      %p109 = scmp.ne.s32.totalorder %s97, %s98
      %p110 = scmp.eq.s32.totalorder %s25, 1
      %p111 = por %p109, %p110
      %p113 = scmp.ne.s32.totalorder %s98, %s112
      %p114 = scmp.eq.s32.totalorder %s25, 0
      %p115 = por %p113, %p114
      %s117 = sadd.s32 %s116, 1
      %p120 = scmp.eq.s32.totalorder %s19, 1
      %p121 = scmp.ne.s32.totalorder %s116, %s118
      %p122 = scmp.eq.s32.totalorder %s19, 0
      %p123 = por %p121, %p122
      %p124 = scmp.ne.s32.totalorder %s116, %s118
      %p125 = scmp.eq.s32.totalorder %s24, 1
      %p126 = por %p124, %p125
      %p127 = scmp.ne.s32.totalorder %s118, %s119
      %p128 = scmp.eq.s32.totalorder %s24, 0
      %p129 = por %p127, %p128
      %p130 = scmp.ne.s32.totalorder %s118, %s119
      %p131 = scmp.eq.s32.totalorder %s25, 1
      %p132 = por %p130, %p131
      %p134 = scmp.ne.s32.totalorder %s119, %s133
      %p135 = scmp.eq.s32.totalorder %s25, 0
      %p136 = por %p134, %p135
      %s138 = sadd.s32 %s137, 1
      %p141 = scmp.eq.s32.totalorder %s19, 1
      %p142 = scmp.ne.s32.totalorder %s137, %s139
      %p143 = scmp.eq.s32.totalorder %s19, 0
      %p144 = por %p142, %p143
      %p145 = scmp.ne.s32.totalorder %s137, %s139
      %p146 = scmp.eq.s32.totalorder %s24, 1
      %p147 = por %p145, %p146
      %p148 = scmp.ne.s32.totalorder %s139, %s140
      %p149 = scmp.eq.s32.totalorder %s24, 0
      %p150 = por %p148, %p149
      %p151 = scmp.ne.s32.totalorder %s139, %s140
      %p152 = scmp.eq.s32.totalorder %s25, 1
      %p153 = por %p151, %p152
      %p155 = scmp.ne.s32.totalorder %s140, %s154
      %p156 = scmp.eq.s32.totalorder %s25, 0
      %p157 = por %p155, %p156
      %s158 = ssub.s32 %s19, %s26
      %p159 = scmp.eq.s32.totalorder %s158, 0
      %s161 = sadd.s32 %s160, 1
      %s162 = scalar_select %p159, %s160, %s161
      %p165 = pneg %p159
      %p166 = scmp.eq.s32.totalorder %s19, 1
      %p167 = por %p165, %p166
      %p168 = scmp.ne.s32.totalorder %s160, %s163
      %p169 = scmp.eq.s32.totalorder %s19, 0
      %p170 = por %p168, %p169
      %p171 = scmp.ne.s32.totalorder %s160, %s163
      %p172 = scmp.eq.s32.totalorder %s24, 1
      %p173 = por %p171, %p172
      %p174 = scmp.ne.s32.totalorder %s163, %s164
      %p175 = scmp.eq.s32.totalorder %s24, 0
      %p176 = por %p174, %p175
      %p177 = scmp.ne.s32.totalorder %s163, %s164
      %p178 = scmp.eq.s32.totalorder %s25, 1
      %p179 = por %p177, %p178
      %p181 = scmp.ne.s32.totalorder %s164, %s180
      %p182 = scmp.eq.s32.totalorder %s25, 0
      %p183 = por %p181, %p182
      %p184 = scmp.le.s32.totalorder 1, %s19
      %p185 = scmp.lt.s32.totalorder %s19, 3
      %p186 = pnand %p184, %p185
      %p187 = pneg %p186
      // Predicated region
      $region9: #{tpu_custom_call.1} parent=5 // pred_check
        _
      $region10: #{tpu_custom_call.1} parent=5 // pred_check_branch
        %189 = sbr.rel (%p186) target = $region12
      $region11: #{tpu_custom_call.1} parent=5 // pred_region
        %s190 = ssub.s32 %s19, 1
        // Predicated region
        $region13: #{tpu_custom_call.1} parent=11 // pred_check
          %p191 = pneg %p66
        $region14: #{tpu_custom_call.1} parent=11 // pred_check_branch
          %193 = sbr.rel (%p191) target = $region16
        $region15: #{tpu_custom_call.1} parent=11 // pred_region
          %s195 = ssub.s32 2304, 2304
          %196 = vsyncadd [#allocation6], %s195
          %s197 = sshll.u32 [#allocation5], 4
          %s198 = int_to_ptr.vmem [resolvable:$true] %s197
          %203 = dma.hbm_to_vmem [thread:$0]  %s1, 2304, %s198, [#allocation6], 256, 256, 16
        $region16: #{tpu_custom_call.1} parent=11 // pred_fallthru
          _
        // Predicated region
        $region17: #{tpu_custom_call.1} parent=11 // pred_check
          %p204 = pneg %p87
        $region18: #{tpu_custom_call.1} parent=11 // pred_check_branch
          %206 = sbr.rel (%p204) target = $region20
        $region19: #{tpu_custom_call.1} parent=11 // pred_region
          %s208 = ssub.s32 256, 256
          %209 = vsyncadd [#allocation6], %s208
          %s211 = sshll.u32 [#allocation7], 4
          %s212 = int_to_ptr.vmem [resolvable:$true] %s211
          %214 = dma.hbm_to_vmem [thread:$0]  %s2, 256, %s212, [#allocation6]
        $region20: #{tpu_custom_call.1} parent=11 // pred_fallthru
          _
        // Predicated region
        $region21: #{tpu_custom_call.1} parent=11 // pred_check
          %p215 = pneg %p108
        $region22: #{tpu_custom_call.1} parent=11 // pred_check_branch
          %217 = sbr.rel (%p215) target = $region24
        $region23: #{tpu_custom_call.1} parent=11 // pred_region
          _
        $region24: #{tpu_custom_call.1} parent=11 // pred_fallthru
          _
        // Predicated region
        $region25: #{tpu_custom_call.1} parent=11 // pred_check
          %p218 = pneg %p129
        $region26: #{tpu_custom_call.1} parent=11 // pred_check_branch
          %220 = sbr.rel (%p218) target = $region28
        $region27: #{tpu_custom_call.1} parent=11 // pred_region
          _
        $region28: #{tpu_custom_call.1} parent=11 // pred_fallthru
          _
        // Predicated region
        $region29: #{tpu_custom_call.1} parent=11 // pred_check
          %p221 = pneg %p150
        $region30: #{tpu_custom_call.1} parent=11 // pred_check_branch
          %223 = sbr.rel (%p221) target = $region32
        $region31: #{tpu_custom_call.1} parent=11 // pred_region
          _
        $region32: #{tpu_custom_call.1} parent=11 // pred_fallthru
          _
      $region12: #{tpu_custom_call.1} parent=5 // pred_fallthru
        _
      %p224 = scmp.lt.s32.totalorder %s19, 2
      // Predicated region
      $region33: #{tpu_custom_call.1} parent=5 // pred_check
        %p225 = pneg %p224
      $region34: #{tpu_custom_call.1} parent=5 // pred_check_branch
        %227 = sbr.rel (%p225) target = $region36
      $region35: #{tpu_custom_call.1} parent=5 // pred_region
        // Predicated region
        $region37: #{tpu_custom_call.1} parent=35 // pred_check
          %p228 = pneg %p39
        $region38: #{tpu_custom_call.1} parent=35 // pred_check_branch
          %230 = sbr.rel (%p228) target = $region40
        $region39: #{tpu_custom_call.1} parent=35 // pred_region
          %s231 = sand.u32 %s29, 1
          %s232 = scalar_lea.sflag [#allocation3], %s231
          %s233 = sand.u32 %s29, 1
          %s234 = smul.addr %s233, 32
          %s235 = scalar_lea.vmem [#allocation2], %s234
          %s236 = smul.u32 2, %s19
          %s238 = ssub.s32 512, 512
          %239 = vsyncadd %s232, %s238
          %s240 = smul.addr %s236, 2
          %s241 = smul.addr %s240, 128
          %s242 = scalar_lea.hbm %s0, %s241
          %s243 = sshll.u32 %s235, 4
          %s244 = int_to_ptr.vmem [resolvable:$true] %s243
          %249 = dma.hbm_to_vmem [thread:$0]  %s242, 512, %s244, %s232, 256, 256, 16
        $region40: #{tpu_custom_call.1} parent=35 // pred_fallthru
          _
      $region36: #{tpu_custom_call.1} parent=5 // pred_fallthru
        _
      %p250 = scmp.le.s32.totalorder 1, %s19
      %p251 = scmp.lt.s32.totalorder %s19, 3
      %p252 = pnand %p250, %p251
      %p253 = pneg %p252
      // Predicated region
      $region41: #{tpu_custom_call.1} parent=5 // pred_check
        _
      $region42: #{tpu_custom_call.1} parent=5 // pred_check_branch
        %255 = sbr.rel (%p252) target = $region44
      $region43: #{tpu_custom_call.1} parent=5 // pred_region
        %s256 = ssub.s32 %s19, 1
        %s257 = sand.u32 %s32, 1
        %s258 = scalar_lea.sflag [#allocation3], %s257
        %s259 = sand.u32 %s32, 1
        %s260 = smul.addr %s259, 32
        %s261 = scalar_lea.vmem [#allocation2], %s260
        // Predicated region
        $region45: #{tpu_custom_call.1} parent=43 // pred_check
          %p262 = pneg %p45
        $region46: #{tpu_custom_call.1} parent=43 // pred_check_branch
          %264 = sbr.rel (%p262) target = $region48
        $region47: #{tpu_custom_call.1} parent=43 // pred_region
          %265 = dma.done %s258, 512
        $region48: #{tpu_custom_call.1} parent=43 // pred_fallthru
          _
        // Predicated region
        $region49: #{tpu_custom_call.1} parent=43 // pred_check
          %p266 = pneg %p66
        $region50: #{tpu_custom_call.1} parent=43 // pred_check_branch
          %268 = sbr.rel (%p266) target = $region52
        $region51: #{tpu_custom_call.1} parent=43 // pred_region
          %269 = dma.done [#allocation6], 2304
        $region52: #{tpu_custom_call.1} parent=43 // pred_fallthru
          _
        // Predicated region
        $region53: #{tpu_custom_call.1} parent=43 // pred_check
          %p270 = pneg %p87
        $region54: #{tpu_custom_call.1} parent=43 // pred_check_branch
          %272 = sbr.rel (%p270) target = $region56
        $region55: #{tpu_custom_call.1} parent=43 // pred_region
          %273 = dma.done [#allocation6], 256
        $region56: #{tpu_custom_call.1} parent=43 // pred_fallthru
          _
        %s274 = sand.u32 %s32, 1
        %s275 = scalar_lea.sflag [#allocation3], %s274
        %s276 = sand.u32 %s32, 1
        %s277 = smul.addr %s276, 32
        %s278 = scalar_lea.vmem [#allocation2], %s277
        %p279 = pneg %p45
        %p280 = pneg %p42
        %p281 = pneg %p66
        %p282 = pneg %p63
        %p283 = pneg %p87
        %p284 = pneg %p84
        %p285 = pneg %p108
        %p286 = pneg %p105
        %p287 = pneg %p129
        %p288 = pneg %p126
        %p289 = pneg %p150
        %p290 = pneg %p147
        %p291 = pneg %p176
        %p292 = pneg %p173
        %s293 = sand.u32 %s163, 1
        %s294 = scalar_lea.sflag [#allocation4], %s293
        %s295 = sand.u32 %s163, 1
        %s296 = smul.addr %s295, 64
        %s297 = scalar_lea.vmem [#allocation8], %s296
        %s298 = smul.u32 2, %s24
        %s299 = smul.u32 2, %s24
        %v300 = vld [vmem:[#allocation5] sm:$0xff]
        %v301 = vld [vmem:[#allocation5 + $0x8] sm:$0xff]
        %v302 = vld [vmem:[#allocation5 + $0x10] sm:$0xff]
        %v303 = vld [vmem:[#allocation5 + $0x18] sm:$0xff]
        %v304 = vld [vmem:[#allocation5 + $0x20] sm:$0xff]
        %v305 = vld [vmem:[#allocation5 + $0x28] sm:$0xff]
        %v306 = vld [vmem:[#allocation5 + $0x30] sm:$0xff]
        %v307 = vld [vmem:[#allocation5 + $0x38] sm:$0xff]
        %v308 = vld [vmem:[#allocation5 + $0x40] sm:$0xff]
        %v309 = vld [vmem:[#allocation5 + $0x48] sm:$0xff]
        %v310 = vld [vmem:[#allocation5 + $0x50] sm:$0xff]
        %v311 = vld [vmem:[#allocation5 + $0x58] sm:$0xff]
        %v312 = vld [vmem:[#allocation5 + $0x60] sm:$0xff]
        %v313 = vld [vmem:[#allocation5 + $0x68] sm:$0xff]
        %v314 = vld [vmem:[#allocation5 + $0x70] sm:$0xff]
        %v315 = vld [vmem:[#allocation5 + $0x78] sm:$0xff]
        %v316 = vld [vmem:[#allocation5 + $0x80] sm:$0xff]
        %v317 = vld [vmem:[#allocation5 + $0x88] sm:$0xff]
        %v318 = vld [vmem:[%s3] sm:$0xff]
        %v319 = vld [vmem:[%s3 + $0x8] sm:$0xff]
        %v320 = vld [vmem:[#allocation7] sm:$0xff]
        %v321 = vld [vmem:[#allocation7 + $0x8] sm:$0xff]
        %v322 = vld [vmem:[%s4] sm:$0xff]
        %v323 = vld [vmem:[%s4 + $0x8] sm:$0xff]
        %v324 = vld [vmem:[%s4 + $0x10] sm:$0xff]
        %v325 = vld [vmem:[%s4 + $0x18] sm:$0xff]
        %v326 = vld [vmem:[%s5] ss:$4 sm:$0x3]
        %s327 = scalar_lea.vmem %s5, 1
        %v328 = vld [vmem:[%s327] ss:$4 sm:$0x3]
        %s329 = scalar_lea.vmem %s5, 2
        %v330 = vld [vmem:[%s329] ss:$4 sm:$0x3]
        %s331 = scalar_lea.vmem %s5, 3
        %v332 = vld [vmem:[%s331] ss:$4 sm:$0x3]
        %v333 = vld [vmem:[%s261] sm:$0xff]
        %v334 = vld [vmem:[%s261 + $0x8] sm:$0xff]
        %335 = vrot.lane.b32.xlu0 %v333, 1
        %v336 = vpop.permute.xlu0 %335
        %337 = vrot.lane.b32.xlu0 %v334, 1
        %v338 = vpop.permute.xlu0 %337
        %v339 = vlaneseq
        %v340 = vand.u32 %v339, 127
        %vm341 = vcmp.lt.s32.totalorder %v340, 1
        %v342 = vsel %vm341, %v336, %v338
        %v343 = vsel %vm341, %v338, %v336
        %v345 = vlaneseq
        %v346 = vshrl.u32 %v345, 7
        %v347 = vsub.s32 0, %v346
        %v348 = vrot.slane %v326, %v347
        %v349 = vlaneseq
        %v350 = vshrl.u32 %v349, 7
        %v351 = vsub.s32 1, %v350
        %v352 = vrot.slane %v326, %v351
        %v355 = vmul.f32 %v343, %v348
        %v356 = vmul.f32 %v342, %v352
        %357 = vrot.lane.b32.xlu0 %v333, 127
        %v358 = vpop.permute.xlu0 %357
        %359 = vrot.lane.b32.xlu0 %v334, 127
        %v360 = vpop.permute.xlu0 %359
        %vm361 = vcmp.lt.s32.totalorder %v340, 127
        %v362 = vsel %vm361, %v358, %v360
        %v363 = vsel %vm361, %v360, %v358
        %v365 = vlaneseq
        %v366 = vshrl.u32 %v365, 7
        %v367 = vsub.s32 0, %v366
        %v368 = vrot.slane %v328, %v367
        %v369 = vlaneseq
        %v370 = vshrl.u32 %v369, 7
        %v371 = vsub.s32 1, %v370
        %v372 = vrot.slane %v328, %v371
        %v375 = vmul.f32 %v362, %v368
        %v376 = vmul.f32 %v363, %v372
        %v377 = vmul.f32 %v355, %v306
        %v378 = vmul.f32 %v356, %v307
        %v379 = vmul.f32 %v333, %v308
        %v380 = vmul.f32 %v334, %v309
        %v381 = vadd.f32 %v377, %v379
        %v382 = vadd.f32 %v378, %v380
        %v383 = vmul.f32 %v375, %v310
        %v384 = vmul.f32 %v376, %v311
        %v385 = vadd.f32 %v381, %v383
        %v386 = vadd.f32 %v382, %v384
        %387 = vrot.lane.b32.xlu0 %v355, 16
        %v388 = vpop.permute.xlu0 %387
        %389 = vrot.lane.b32.xlu0 %v356, 16
        %v390 = vpop.permute.xlu0 %389
        %vm391 = vcmp.lt.s32.totalorder %v340, 16
        %v392 = vsel %vm391, %v388, %v390
        %v393 = vsel %vm391, %v390, %v388
        %v394 = vmul.f32 %v393, %v300
        %v395 = vmul.f32 %v392, %v301
        %396 = vrot.lane.b32.xlu0 %v333, 16
        %v397 = vpop.permute.xlu0 %396
        %398 = vrot.lane.b32.xlu0 %v334, 16
        %v399 = vpop.permute.xlu0 %398
        %v400 = vsel %vm391, %v397, %v399
        %v401 = vsel %vm391, %v399, %v397
        %v402 = vmul.f32 %v401, %v302
        %v403 = vmul.f32 %v400, %v303
        %v404 = vadd.f32 %v394, %v402
        %v405 = vadd.f32 %v395, %v403
        %406 = vrot.lane.b32.xlu0 %v375, 16
        %v407 = vpop.permute.xlu0 %406
        %408 = vrot.lane.b32.xlu0 %v376, 16
        %v409 = vpop.permute.xlu0 %408
        %v410 = vsel %vm391, %v407, %v409
        %v411 = vsel %vm391, %v409, %v407
        %v412 = vmul.f32 %v411, %v304
        %v413 = vmul.f32 %v410, %v305
        %v414 = vadd.f32 %v404, %v412
        %v415 = vadd.f32 %v405, %v413
        %416 = vrot.lane.b32.xlu0 %v355, 112
        %v417 = vpop.permute.xlu0 %416
        %418 = vrot.lane.b32.xlu0 %v356, 112
        %v419 = vpop.permute.xlu0 %418
        %vm420 = vcmp.lt.s32.totalorder %v340, 112
        %v421 = vsel %vm420, %v417, %v419
        %v422 = vsel %vm420, %v419, %v417
        %v423 = vmul.f32 %v421, %v312
        %v424 = vmul.f32 %v422, %v313
        %425 = vrot.lane.b32.xlu0 %v333, 112
        %v426 = vpop.permute.xlu0 %425
        %427 = vrot.lane.b32.xlu0 %v334, 112
        %v428 = vpop.permute.xlu0 %427
        %v429 = vsel %vm420, %v426, %v428
        %v430 = vsel %vm420, %v428, %v426
        %v431 = vmul.f32 %v429, %v314
        %v432 = vmul.f32 %v430, %v315
        %v433 = vadd.f32 %v423, %v431
        %v434 = vadd.f32 %v424, %v432
        %435 = vrot.lane.b32.xlu0 %v375, 112
        %v436 = vpop.permute.xlu0 %435
        %437 = vrot.lane.b32.xlu0 %v376, 112
        %v438 = vpop.permute.xlu0 %437
        %v439 = vsel %vm420, %v436, %v438
        %v440 = vsel %vm420, %v438, %v436
        %v441 = vmul.f32 %v439, %v316
        %v442 = vmul.f32 %v440, %v317
        %v443 = vadd.f32 %v433, %v441
        %v444 = vadd.f32 %v434, %v442
        %v446 = vlaneseq
        %v447 = vshrl.u32 %v446, 7
        %v448 = vsub.s32 0, %v447
        %v449 = vrot.slane %v330, %v448
        %v450 = vlaneseq
        %v451 = vshrl.u32 %v450, 7
        %v452 = vsub.s32 1, %v451
        %v453 = vrot.slane %v330, %v452
        %v456 = vmul.f32 %v414, %v449
        %v457 = vmul.f32 %v415, %v453
        %v458 = vadd.f32 %v385, %v456
        %v459 = vadd.f32 %v386, %v457
        %v461 = vlaneseq
        %v462 = vshrl.u32 %v461, 7
        %v463 = vsub.s32 0, %v462
        %v464 = vrot.slane %v332, %v463
        %v465 = vlaneseq
        %v466 = vshrl.u32 %v465, 7
        %v467 = vsub.s32 1, %v466
        %v468 = vrot.slane %v332, %v467
        %v471 = vmul.f32 %v443, %v464
        %v472 = vmul.f32 %v444, %v468
        %v473 = vadd.f32 %v458, %v471
        %v474 = vadd.f32 %v459, %v472
        %v475 = vadd.f32 %v473, %v320
        %v476 = vadd.f32 %v474, %v321
        %v477 = vmax.f32 %v475, 0.0
        %v478 = vmax.f32 %v476, 0.0
        %v479 = vmin.f32 %v477, 6.0
        %v480 = vmin.f32 %v478, 6.0
        %vm481 = vcmask 64512
        %v483 = vsel %vm481, %v318, 0
        %v486 = vsel %vm481, %v319, 0
        %488 = vmatprep.subr.mxu0 %v480
        %489 = vmatpush1.msra.mxu0 %v479
        %490 = vmatprep.subr.mxu0 0.0
        %491 = vmatpush1.msra.mxu0 0.0
        %492 = vmatprep.subr.mxu0 0.0
        %493 = vmatpush1.msra.mxu0 0.0
        %494 = vmatprep.subr.mxu0 0.0
        %495 = vmatpush1.msra.mxu0 0.0
        %496 = vmatprep.subr.mxu0 0.0
        %497 = vmatpush1.msra.mxu0 0.0
        %498 = vmatprep.subr.mxu0 0.0
        %499 = vmatpush1.msra.mxu0 0.0
        %500 = vmatprep.subr.mxu0 0.0
        %501 = vmatpush1.msra.mxu0 0.0
        %502 = vmatprep.subr.mxu0 0.0
        %503 = vmatpush1.msra.mxu0 0.0
        %504 = vmatprep.subr.mxu0 0.0
        %505 = vmatpush1.msra.mxu0 0.0
        %506 = vmatprep.subr.mxu0 0.0
        %507 = vmatpush1.msra.mxu0 0.0
        %508 = vmatprep.subr.mxu0 0.0
        %509 = vmatpush1.msra.mxu0 0.0
        %510 = vmatprep.subr.mxu0 0.0
        %511 = vmatpush1.msra.mxu0 0.0
        %512 = vmatprep.subr.mxu0 0.0
        %513 = vmatpush1.msra.mxu0 0.0
        %514 = vmatprep.subr.mxu0 0.0
        %515 = vmatpush1.msra.mxu0 0.0
        %516 = vmatprep.subr.mxu0 0.0
        %517 = vmatpush1.msra.mxu0 0.0
        %518 = vmatprep.subr.mxu0 0.0
        %519 = vmatpush1.msra.mxu0 0.0
        %520 = vmatprep.subr.mxu0 0.0
        %521 = vmatpush1.msra.mxu0 0.0
        %522 = vmatprep.subr.mxu0 0.0
        %523 = vmatpush1.msra.mxu0 0.0
        %524 = vmatprep.subr.mxu0 0.0
        %525 = vmatpush1.msra.mxu0 0.0
        %526 = vmatprep.subr.mxu0 0.0
        %527 = vmatpush1.msra.mxu0 0.0
        %528 = vmatprep.subr.mxu0 0.0
        %529 = vmatpush1.msra.mxu0 0.0
        %530 = vmatprep.subr.mxu0 0.0
        %531 = vmatpush1.msra.mxu0 0.0
        %532 = vmatprep.subr.mxu0 0.0
        %533 = vmatpush1.msra.mxu0 0.0
        %534 = vmatprep.subr.mxu0 0.0
        %535 = vmatpush1.msra.mxu0 0.0
        %536 = vmatprep.subr.mxu0 0.0
        %537 = vmatpush1.msra.mxu0 0.0
        %538 = vmatprep.subr.mxu0 0.0
        %539 = vmatpush1.msra.mxu0 0.0
        %540 = vmatprep.subr.mxu0 0.0
        %541 = vmatpush1.msra.mxu0 0.0
        %542 = vmatprep.subr.mxu0 0.0
        %543 = vmatpush1.msra.mxu0 0.0
        %544 = vmatprep.subr.mxu0 0.0
        %545 = vmatpush1.msra.mxu0 0.0
        %546 = vmatprep.subr.mxu0 0.0
        %547 = vmatpush1.msra.mxu0 0.0
        %548 = vmatprep.subr.mxu0 0.0
        %549 = vmatpush1.msra.mxu0 0.0
        %550 = vmatprep.subr.mxu0 0.0
        %551 = vmatpush1.msra.mxu0 0.0
        %552 = vmatprep.mubr.f32.mxu0 0.0
        %553 = vmatmul.mubr.f32.gmra.mrb[0].mxu0 %v483
        %v554 = vpop.f32.mrb[0].mxu0
        %v555 = vadd.f32 %v322, %v554
        %v556 = vpop.f32.mrb[0].mxu0
        %v557 = vadd.f32 %v323, %v556
        %558 = vmatprep.mubr.f32.mxu0 0.0
        %559 = vmatmul.mubr.f32.gmra.mrb[0].mxu0 %v486
        %v560 = vpop.f32.mrb[0].mxu0
        %v561 = vadd.f32 %v324, %v560
        %v562 = vpop.f32.mrb[0].mxu0
        %v563 = vadd.f32 %v325, %v562
        %564 = vdwg.mxu0
        %v565 = vmax.f32 %v555, 0.0
        %v566 = vmax.f32 %v557, 0.0
        %v567 = vmax.f32 %v561, 0.0
        %v568 = vmax.f32 %v563, 0.0
        %v569 = vmin.f32 %v565, 6.0
        %v570 = vmin.f32 %v566, 6.0
        %v571 = vmin.f32 %v567, 6.0
        %v572 = vmin.f32 %v568, 6.0
        %573 = vst [vmem:[%s297] sm:$0xff] %v569
        %574 = vst [vmem:[%s297 + $0x8] sm:$0xff] %v570
        %575 = vst [vmem:[%s297 + $0x10] sm:$0xff] %v571
        %576 = vst [vmem:[%s297 + $0x18] sm:$0xff] %v572
        %s577 = scalar_lea.vmem %s261, 16 [#allocation2]
        %v578 = vld [vmem:[%s577] sm:$0xff]
        %v579 = vld [vmem:[%s577 + $0x8] sm:$0xff]
        %580 = vrot.lane.b32.xlu0 %v578, 1
        %v581 = vpop.permute.xlu0 %580
        %582 = vrot.lane.b32.xlu0 %v579, 1
        %v583 = vpop.permute.xlu0 %582
        %v584 = vsel %vm341, %v581, %v583
        %v585 = vsel %vm341, %v583, %v581
        %v586 = vmul.f32 %v585, %v348
        %v587 = vmul.f32 %v584, %v352
        %588 = vrot.lane.b32.xlu0 %v578, 127
        %v589 = vpop.permute.xlu0 %588
        %590 = vrot.lane.b32.xlu0 %v579, 127
        %v591 = vpop.permute.xlu0 %590
        %v592 = vsel %vm361, %v589, %v591
        %v593 = vsel %vm361, %v591, %v589
        %v594 = vmul.f32 %v592, %v368
        %v595 = vmul.f32 %v593, %v372
        %v596 = vmul.f32 %v586, %v306
        %v597 = vmul.f32 %v587, %v307
        %v598 = vmul.f32 %v578, %v308
        %v599 = vmul.f32 %v579, %v309
        %v600 = vadd.f32 %v596, %v598
        %v601 = vadd.f32 %v597, %v599
        %v602 = vmul.f32 %v594, %v310
        %v603 = vmul.f32 %v595, %v311
        %v604 = vadd.f32 %v600, %v602
        %v605 = vadd.f32 %v601, %v603
        %606 = vrot.lane.b32.xlu0 %v586, 16
        %v607 = vpop.permute.xlu0 %606
        %608 = vrot.lane.b32.xlu0 %v587, 16
        %v609 = vpop.permute.xlu0 %608
        %v610 = vsel %vm391, %v607, %v609
        %v611 = vsel %vm391, %v609, %v607
        %v612 = vmul.f32 %v611, %v300
        %v613 = vmul.f32 %v610, %v301
        %614 = vrot.lane.b32.xlu0 %v578, 16
        %v615 = vpop.permute.xlu0 %614
        %616 = vrot.lane.b32.xlu0 %v579, 16
        %v617 = vpop.permute.xlu0 %616
        %v618 = vsel %vm391, %v615, %v617
        %v619 = vsel %vm391, %v617, %v615
        %v620 = vmul.f32 %v619, %v302
        %v621 = vmul.f32 %v618, %v303
        %v622 = vadd.f32 %v612, %v620
        %v623 = vadd.f32 %v613, %v621
        %624 = vrot.lane.b32.xlu0 %v594, 16
        %v625 = vpop.permute.xlu0 %624
        %626 = vrot.lane.b32.xlu0 %v595, 16
        %v627 = vpop.permute.xlu0 %626
        %v628 = vsel %vm391, %v625, %v627
        %v629 = vsel %vm391, %v627, %v625
        %v630 = vmul.f32 %v629, %v304
        %v631 = vmul.f32 %v628, %v305
        %v632 = vadd.f32 %v622, %v630
        %v633 = vadd.f32 %v623, %v631
        %634 = vrot.lane.b32.xlu0 %v586, 112
        %v635 = vpop.permute.xlu0 %634
        %636 = vrot.lane.b32.xlu0 %v587, 112
        %v637 = vpop.permute.xlu0 %636
        %v638 = vsel %vm420, %v635, %v637
        %v639 = vsel %vm420, %v637, %v635
        %v640 = vmul.f32 %v638, %v312
        %v641 = vmul.f32 %v639, %v313
        %642 = vrot.lane.b32.xlu0 %v578, 112
        %v643 = vpop.permute.xlu0 %642
        %644 = vrot.lane.b32.xlu0 %v579, 112
        %v645 = vpop.permute.xlu0 %644
        %v646 = vsel %vm420, %v643, %v645
        %v647 = vsel %vm420, %v645, %v643
        %v648 = vmul.f32 %v646, %v314
        %v649 = vmul.f32 %v647, %v315
        %v650 = vadd.f32 %v640, %v648
        %v651 = vadd.f32 %v641, %v649
        %652 = vrot.lane.b32.xlu0 %v594, 112
        %v653 = vpop.permute.xlu0 %652
        %654 = vrot.lane.b32.xlu0 %v595, 112
        %v655 = vpop.permute.xlu0 %654
        %v656 = vsel %vm420, %v653, %v655
        %v657 = vsel %vm420, %v655, %v653
        %v658 = vmul.f32 %v656, %v316
        %v659 = vmul.f32 %v657, %v317
        %v660 = vadd.f32 %v650, %v658
        %v661 = vadd.f32 %v651, %v659
        %v662 = vmul.f32 %v632, %v449
        %v663 = vmul.f32 %v633, %v453
        %v664 = vadd.f32 %v604, %v662
        %v665 = vadd.f32 %v605, %v663
        %v666 = vmul.f32 %v660, %v464
        %v667 = vmul.f32 %v661, %v468
        %v668 = vadd.f32 %v664, %v666
        %v669 = vadd.f32 %v665, %v667
        %v670 = vadd.f32 %v668, %v320
        %v671 = vadd.f32 %v669, %v321
        %v672 = vmax.f32 %v670, 0.0
        %v673 = vmax.f32 %v671, 0.0
        %v674 = vmin.f32 %v672, 6.0
        %v675 = vmin.f32 %v673, 6.0
        %676 = vmatprep.subr.mxu0 %v675
        %677 = vmatpush1.msra.mxu0 %v674
        %678 = vmatprep.subr.mxu0 0.0
        %679 = vmatpush1.msra.mxu0 0.0
        %680 = vmatprep.subr.mxu0 0.0
        %681 = vmatpush1.msra.mxu0 0.0
        %682 = vmatprep.subr.mxu0 0.0
        %683 = vmatpush1.msra.mxu0 0.0
        %684 = vmatprep.subr.mxu0 0.0
        %685 = vmatpush1.msra.mxu0 0.0
        %686 = vmatprep.subr.mxu0 0.0
        %687 = vmatpush1.msra.mxu0 0.0
        %688 = vmatprep.subr.mxu0 0.0
        %689 = vmatpush1.msra.mxu0 0.0
        %690 = vmatprep.subr.mxu0 0.0
        %691 = vmatpush1.msra.mxu0 0.0
        %692 = vmatprep.subr.mxu0 0.0
        %693 = vmatpush1.msra.mxu0 0.0
        %694 = vmatprep.subr.mxu0 0.0
        %695 = vmatpush1.msra.mxu0 0.0
        %696 = vmatprep.subr.mxu0 0.0
        %697 = vmatpush1.msra.mxu0 0.0
        %698 = vmatprep.subr.mxu0 0.0
        %699 = vmatpush1.msra.mxu0 0.0
        %700 = vmatprep.subr.mxu0 0.0
        %701 = vmatpush1.msra.mxu0 0.0
        %702 = vmatprep.subr.mxu0 0.0
        %703 = vmatpush1.msra.mxu0 0.0
        %704 = vmatprep.subr.mxu0 0.0
        %705 = vmatpush1.msra.mxu0 0.0
        %706 = vmatprep.subr.mxu0 0.0
        %707 = vmatpush1.msra.mxu0 0.0
        %708 = vmatprep.subr.mxu0 0.0
        %709 = vmatpush1.msra.mxu0 0.0
        %710 = vmatprep.subr.mxu0 0.0
        %711 = vmatpush1.msra.mxu0 0.0
        %712 = vmatprep.subr.mxu0 0.0
        %713 = vmatpush1.msra.mxu0 0.0
        %714 = vmatprep.subr.mxu0 0.0
        %715 = vmatpush1.msra.mxu0 0.0
        %716 = vmatprep.subr.mxu0 0.0
        %717 = vmatpush1.msra.mxu0 0.0
        %718 = vmatprep.subr.mxu0 0.0
        %719 = vmatpush1.msra.mxu0 0.0
        %720 = vmatprep.subr.mxu0 0.0
        %721 = vmatpush1.msra.mxu0 0.0
        %722 = vmatprep.subr.mxu0 0.0
        %723 = vmatpush1.msra.mxu0 0.0
        %724 = vmatprep.subr.mxu0 0.0
        %725 = vmatpush1.msra.mxu0 0.0
        %726 = vmatprep.subr.mxu0 0.0
        %727 = vmatpush1.msra.mxu0 0.0
        %728 = vmatprep.subr.mxu0 0.0
        %729 = vmatpush1.msra.mxu0 0.0
        %730 = vmatprep.subr.mxu0 0.0
        %731 = vmatpush1.msra.mxu0 0.0
        %732 = vmatprep.subr.mxu0 0.0
        %733 = vmatpush1.msra.mxu0 0.0
        %734 = vmatprep.subr.mxu0 0.0
        %735 = vmatpush1.msra.mxu0 0.0
        %736 = vmatprep.subr.mxu0 0.0
        %737 = vmatpush1.msra.mxu0 0.0
        %738 = vmatprep.subr.mxu0 0.0
        %739 = vmatpush1.msra.mxu0 0.0
        %740 = vmatprep.mubr.f32.mxu0 0.0
        %741 = vmatmul.mubr.f32.gmra.mrb[0].mxu0 %v483
        %v742 = vpop.f32.mrb[0].mxu0
        %v743 = vadd.f32 %v322, %v742
        %v744 = vpop.f32.mrb[0].mxu0
        %v745 = vadd.f32 %v323, %v744
        %746 = vmatprep.mubr.f32.mxu0 0.0
        %747 = vmatmul.mubr.f32.gmra.mrb[0].mxu0 %v486
        %v748 = vpop.f32.mrb[0].mxu0
        %v749 = vadd.f32 %v324, %v748
        %v750 = vpop.f32.mrb[0].mxu0
        %v751 = vadd.f32 %v325, %v750
        %752 = vdwg.mxu0
        %v753 = vmax.f32 %v743, 0.0
        %v754 = vmax.f32 %v745, 0.0
        %v755 = vmax.f32 %v749, 0.0
        %v756 = vmax.f32 %v751, 0.0
        %v757 = vmin.f32 %v753, 6.0
        %v758 = vmin.f32 %v754, 6.0
        %v759 = vmin.f32 %v755, 6.0
        %v760 = vmin.f32 %v756, 6.0
        %s761 = scalar_lea.vmem %s297, 32 [#allocation8]
        %762 = vst [vmem:[%s761] sm:$0xff] %v757
        %763 = vst [vmem:[%s761 + $0x8] sm:$0xff] %v758
        %764 = vst [vmem:[%s761 + $0x10] sm:$0xff] %v759
        %765 = vst [vmem:[%s761 + $0x18] sm:$0xff] %v760
        %s766 = sand.u32 %s163, 1
        %s767 = scalar_lea.sflag [#allocation4], %s766
        %s768 = sand.u32 %s163, 1
        %s769 = smul.addr %s768, 64
        %s770 = scalar_lea.vmem [#allocation8], %s769
        // Predicated region
        $region57: #{tpu_custom_call.1} parent=43 // pred_check
          %p771 = pneg %p173
        $region58: #{tpu_custom_call.1} parent=43 // pred_check_branch
          %773 = sbr.rel (%p771) target = $region60
        $region59: #{tpu_custom_call.1} parent=43 // pred_region
          %s774 = smul.u32 2, %s24
          %s776 = ssub.s32 1024, 1024
          %777 = vsyncadd %s767, %s776
          %s778 = smul.addr %s774, 4
          %s779 = smul.addr %s778, 128
          %s780 = scalar_lea.hbm %s6, %s779
          %s781 = sshll.u32 %s770, 4
          %s782 = int_to_ptr.vmem [resolvable:$true] %s781
          %787 = dma.vmem_to_hbm [thread:$0]  %s782, 1024, %s780, %s767, 256, 256, 16
        $region60: #{tpu_custom_call.1} parent=43 // pred_fallthru
          _
      $region44: #{tpu_custom_call.1} parent=5 // pred_fallthru
        _
      %p788 = scmp.le.s32.totalorder 2, %s19
      // Predicated region
      $region61: #{tpu_custom_call.1} parent=5 // pred_check
        %p789 = pneg %p788
      $region62: #{tpu_custom_call.1} parent=5 // pred_check_branch
        %791 = sbr.rel (%p789) target = $region64
      $region63: #{tpu_custom_call.1} parent=5 // pred_region
        %s792 = ssub.s32 %s19, 2
        // Predicated region
        $region65: #{tpu_custom_call.1} parent=63 // pred_check
          %p793 = pneg %p179
        $region66: #{tpu_custom_call.1} parent=63 // pred_check_branch
          %795 = sbr.rel (%p793) target = $region68
        $region67: #{tpu_custom_call.1} parent=63 // pred_region
          %s796 = sand.u32 %s164, 1
          %s797 = scalar_lea.sflag [#allocation4], %s796
          %s798 = sand.u32 %s164, 1
          %s799 = smul.addr %s798, 64
          %s800 = scalar_lea.vmem [#allocation8], %s799
          %801 = dma.done %s797, 1024
        $region68: #{tpu_custom_call.1} parent=63 // pred_fallthru
          _
      $region64: #{tpu_custom_call.1} parent=5 // pred_fallthru
        _
    $region6: #{tpu_custom_call.1} parent=1 // loop_footer
      %s23 = sadd.s32 1, %s19
    $region7: #{tpu_custom_call.1} parent=1 // loop_footer_branch
      %18 = sbr.rel target = $region3
    $region8: #{tpu_custom_call.1} parent=1 // loop_exit
      _
    %802 = vsyncpa [#allocation3], 1
    %s803 = scalar_lea.sflag [#allocation3], 1
    %804 = vsyncpa %s803, 1
    %805 = vsyncpa [#allocation6], 1
    %806 = vsyncpa [#allocation4], 1
    %s807 = scalar_lea.sflag [#allocation4], 1
    %808 = vsyncpa %s807, 1

</llo_original>
